<compile_context>
chip_gen: v5e
topology: v5e:2x2
jax: 0.10.0
libtpu: 0.0.40
codegen_flags: <defaults>
</compile_context>

<pallas_src>
import functools

import numpy as np
import jax
import jax.numpy as jnp
from jax.experimental import pallas as pl
from jax.experimental.pallas import tpu as pltpu


def _round_up(x: int, m: int) -> int:
    return ((x + m - 1) // m) * m


def _grad_area_kernel(y_ref, w_sum_ref, w_h_ref, w_v_ref, o_ref, *,
                      ncols: int, n_pad: int, penalty: float, compute_dtype):
    # y_ref: (TB, n_pad) input dtype; w_*_ref: (n_pad, 1) compute dtype;
    # o_ref: (TB, 1) f32.
    y = y_ref[...].astype(compute_dtype)

    # Neighbors via circular lane rotation (XLU slot); wrap-around pairs are
    # killed by the precomputed 0/1 boundary masks in the weight columns.
    y_right = pltpu.roll(y, shift=n_pad - 1, axis=1)            # y[(i+1) % n_pad]
    shift_below = (n_pad - ncols) % n_pad
    y_below = y if shift_below == 0 else pltpu.roll(y, shift=shift_below, axis=1)

    hd = jnp.abs(y - y_right)    # |y[i] - y[i+1]|
    vd = jnp.abs(y - y_below)    # |y[i] - y[i+W]|

    # Cross-lane reductions on the (otherwise idle) MXU: three matvecs with
    # 0/1 weight columns, accumulated in f32.
    prec = jax.lax.Precision.HIGHEST if compute_dtype == jnp.float32 else None
    area = jnp.dot(y, w_sum_ref[...], preferred_element_type=jnp.float32,
                   precision=prec)
    tv = (jnp.dot(hd, w_h_ref[...], preferred_element_type=jnp.float32,
                  precision=prec)
          + jnp.dot(vd, w_v_ref[...], preferred_element_type=jnp.float32,
                    precision=prec))
    o_ref[...] = area - jnp.float32(penalty) * tv


def _compute_dtype_for(in_dtype):
    """bf16-native elementwise math where the VPU supports it; else f32."""
    if jnp.dtype(in_dtype) == jnp.dtype(jnp.bfloat16):
        kind = ""
        try:
            kind = jax.devices()[0].device_kind.lower()
        except Exception:
            pass
        # v2-v5 have no bf16 VALUs -> upcast; v6e / v7x keep bf16 math.
        if not any(t in kind for t in ("v2", "v3", "v4", "v5")):
            return jnp.bfloat16
    return jnp.float32


def _choose_tb(b: int, n_pad: int, in_itemsize: int, comp_itemsize: int,
               sub_mult: int) -> int:
    row_in = n_pad * in_itemsize
    # Target ~1 MiB per input block (DMA comfortably hides the fixed per-step
    # grid overhead), capped at 1024 rows.
    target = max(sub_mult, (1 << 20) // max(1, row_in))
    target = _round_up(min(target, 1024), sub_mult)
    # Keep 2x double-buffered input + ~5 live compute-dtype tiles well under
    # the VMEM limit (also safe on v7x's 64 MiB physical VMEM).
    live_per_row = 2 * row_in + 5 * n_pad * comp_itemsize
    budget_rows = max(sub_mult, ((24 << 20) // max(1, live_per_row))
                      // sub_mult * sub_mult)
    tb = min(target, budget_rows)
    b_pad_full = _round_up(b, sub_mult)
    # >=2 grid steps when the batch allows it, so the "parallel" axis can be
    # sharded across both TensorCores on v7x.
    if b_pad_full >= 2 * sub_mult:
        tb = min(tb, _round_up(pl.cdiv(b_pad_full, 2), sub_mult))
    tb = min(tb, b_pad_full)
    return max(tb, sub_mult)


def gradient_aware_area_util(Y: jax.Array, penalty_param: float,
                             image_shape) -> jax.Array:
    """Pallas implementation of GradientAwareAreaUtil.forward.

    Y: (B, H*W) flattened images (f32 or bf16).  Returns (B, 1) float32.
    """
    nrows, ncols = image_shape
    B, n_pix = Y.shape
    assert n_pix == nrows * ncols

    comp_dtype = _compute_dtype_for(Y.dtype)
    comp_itemsize = jnp.dtype(comp_dtype).itemsize

    # Pad the lane axis to a multiple of 128 so rolls / MXU feeds stay on full
    # aligned vregs; padded lanes are zeroed out of every weight column.
    n_pad = _round_up(n_pix, 128)
    if n_pad != n_pix:
        Y = jnp.pad(Y, ((0, 0), (0, n_pad - n_pix)))

    sub_mult = max(8, 32 // Y.dtype.itemsize)        # 8 (f32), 16 (bf16)
    tb = _choose_tb(B, n_pad, Y.dtype.itemsize, comp_itemsize, sub_mult)
    b_pad = _round_up(B, tb)
    if b_pad != B:
        # Zero-padded rows contribute exactly 0 and are sliced off below.
        Y = jnp.pad(Y, ((0, b_pad - B), (0, 0)))

    # Precomputed per-lane 0/1 boundary masks (penalty applied in-kernel as an
    # f32 scalar, so bf16 weights remain exact).
    idx = np.arange(n_pad)
    col = idx % ncols
    valid = idx < n_pix
    w_sum = valid.astype(np.float32).reshape(n_pad, 1)
    w_h = (valid & (col < ncols - 1)).astype(np.float32).reshape(n_pad, 1)
    w_v = (idx + ncols < n_pix).astype(np.float32).reshape(n_pad, 1)
    w_sum = jnp.asarray(w_sum, dtype=comp_dtype)
    w_h = jnp.asarray(w_h, dtype=comp_dtype)
    w_v = jnp.asarray(w_v, dtype=comp_dtype)

    kernel = functools.partial(
        _grad_area_kernel, ncols=int(ncols), n_pad=int(n_pad),
        penalty=float(penalty_param), compute_dtype=comp_dtype)

    cost = pl.CostEstimate(
        flops=10 * b_pad * n_pad,
        transcendentals=0,
        bytes_accessed=b_pad * n_pad * Y.dtype.itemsize
        + 3 * n_pad * comp_itemsize + b_pad * 4,
    )

    const_spec = pl.BlockSpec((n_pad, 1), lambda i: (0, 0))
    out = pl.pallas_call(
        kernel,
        out_shape=jax.ShapeDtypeStruct((b_pad, 1), jnp.float32),
        grid_spec=pltpu.PrefetchScalarGridSpec(
            num_scalar_prefetch=0,
            grid=(b_pad // tb,),
            in_specs=[pl.BlockSpec((tb, n_pad), lambda i: (i, 0)),
                      const_spec, const_spec, const_spec],
            out_specs=pl.BlockSpec((tb, 1), lambda i: (i, 0)),
        ),
        compiler_params=pltpu.CompilerParams(
            dimension_semantics=("parallel",),
            vmem_limit_bytes=32 * 1024 * 1024,
        ),
        cost_estimate=cost,
    )(Y, w_sum, w_h, w_v)
    return out[:B]


def _reference(Y, penalty_param, image_shape):
    # Pure-JAX reference mirroring the PyTorch semantics.
    nrows, ncols = image_shape
    y = Y.reshape(Y.shape[0], nrows, ncols).astype(jnp.float32)
    areas = jnp.sum(y, axis=(1, 2))[:, None]
    v = jnp.sum(jnp.abs(y[:, :-1, :] - y[:, 1:, :]), axis=(1, 2))
    h = jnp.sum(jnp.abs(y[:, :, :-1] - y[:, :, 1:]), axis=(1, 2))
    return areas - penalty_param * (v + h)[:, None]


if __name__ == "__main__":
    penalty_param = 0.5
    key = jax.random.PRNGKey(0)
    k1, k2, k3 = jax.random.split(key, 3)

    # Case 1: small f32 batch, 8x16 images (128 pixels, single grid step).
    shape1 = (8, 16)
    n1 = shape1[0] * shape1[1]
    Y1 = jax.random.uniform(k1, (4, n1), dtype=jnp.float32)
    o1 = jax.block_until_ready(
        gradient_aware_area_util(Y1, penalty_param, shape1))
    r1 = _reference(Y1, penalty_param, shape1)
    assert o1.shape == (4, 1)
    assert jnp.allclose(o1, r1, rtol=1e-4, atol=1e-4), (o1, r1)

    # Case 2: batch not a multiple of the tile -> padded tail + 2 grid steps
    # (exercises the pipelined / parallel batch axis).
    Y2 = jax.random.uniform(k2, (20, n1), dtype=jnp.float32)
    o2 = jax.block_until_ready(
        gradient_aware_area_util(Y2, penalty_param, shape1))
    r2 = _reference(Y2, penalty_param, shape1)
    assert o2.shape == (20, 1)
    assert jnp.allclose(o2, r2, rtol=1e-4, atol=1e-4), (o2, r2)

    # Case 3: bf16 input stays bf16 on the wire (bf16-native math on v6e/v7x,
    # upcast inside the kernel on older chips).
    Yb = Y1.astype(jnp.bfloat16)
    ob = jax.block_until_ready(
        gradient_aware_area_util(Yb, penalty_param, shape1))
    rb = _reference(Yb.astype(jnp.float32), penalty_param, shape1)
    assert jnp.allclose(ob, rb, rtol=1e-2, atol=1e-2), (ob, rb)

    # Case 4: pixel count not a multiple of 128 (5x7 image, lane-padded).
    shape4 = (5, 7)
    Y4 = jax.random.uniform(k3, (6, shape4[0] * shape4[1]), dtype=jnp.float32)
    o4 = jax.block_until_ready(
        gradient_aware_area_util(Y4, penalty_param, shape4))
    r4 = _reference(Y4, penalty_param, shape4)
    assert o4.shape == (6, 1)
    assert jnp.allclose(o4, r4, rtol=1e-4, atol=1e-4), (o4, r4)

    print("KERNEL_OK")
</pallas_src>

<mosaic_0001>
module attributes {stable_mosaic.version = 11 : i64} {
  func.func @_grad_area_kernel(%arg0: i32, %arg1: memref<8x128xf32, #tpu.memory_space<vmem>>, %arg2: memref<128x1xf32, #tpu.memory_space<vmem>>, %arg3: memref<128x1xf32, #tpu.memory_space<vmem>>, %arg4: memref<128x1xf32, #tpu.memory_space<vmem>>, %arg5: memref<8x1xf32, #tpu.memory_space<vmem>>) attributes {dimension_semantics = [#tpu.dimension_semantics<parallel>], iteration_bounds = array<i64: 1>, scalar_prefetch = 0 : i64, scratch_operands = 0 : i64, tpu.core_type = #tpu.core_type<tc>, window_params = [{transform_indices = @transform_0, window_bounds = array<i64: 8, 128>}, {pipeline_mode = #tpu.pipeline_mode<synchronous>, transform_indices = @transform_1, window_bounds = array<i64: 128, 1>}, {pipeline_mode = #tpu.pipeline_mode<synchronous>, transform_indices = @transform_2, window_bounds = array<i64: 128, 1>}, {pipeline_mode = #tpu.pipeline_mode<synchronous>, transform_indices = @transform_3, window_bounds = array<i64: 128, 1>}, {transform_indices = @transform_4, window_bounds = array<i64: 8, 1>}]} {
    %c0 = arith.constant 0 : index
    %c0_0 = arith.constant 0 : index
    %0 = vector.load %arg1[%c0, %c0_0] : memref<8x128xf32, #tpu.memory_space<vmem>>, vector<8x128xf32>
    %c127_i32 = arith.constant 127 : i32
    %1 = tpu.dynamic_rotate %0 by %c127_i32 dim 1 : vector<8x128xf32>, i32 -> vector<8x128xf32>
    %c112_i32 = arith.constant 112 : i32
    %2 = tpu.dynamic_rotate %0 by %c112_i32 dim 1 : vector<8x128xf32>, i32 -> vector<8x128xf32>
    %3 = arith.subf %0, %1 : vector<8x128xf32>
    %4 = math.absf %3 : vector<8x128xf32>
    %5 = arith.subf %0, %2 : vector<8x128xf32>
    %6 = math.absf %5 : vector<8x128xf32>
    %c0_1 = arith.constant 0 : index
    %c0_2 = arith.constant 0 : index
    %7 = vector.load %arg2[%c0_1, %c0_2] : memref<128x1xf32, #tpu.memory_space<vmem>>, vector<128x1xf32>
    %cst = arith.constant dense<0.000000e+00> : vector<8x1xf32>
    %8 = tpu.matmul %0, %7, %cst {dimension_numbers = #tpu.dot_dimension_numbers<[1], [0], [0], [1], [0, 0, 1, 1], [], []>, precision = #tpu.contract_precision<fp32>} : vector<8x128xf32>, vector<128x1xf32>, vector<8x1xf32> -> vector<8x1xf32>
    %c0_3 = arith.constant 0 : index
    %c0_4 = arith.constant 0 : index
    %9 = vector.load %arg3[%c0_3, %c0_4] : memref<128x1xf32, #tpu.memory_space<vmem>>, vector<128x1xf32>
    %cst_5 = arith.constant dense<0.000000e+00> : vector<8x1xf32>
    %10 = tpu.matmul %4, %9, %cst_5 {dimension_numbers = #tpu.dot_dimension_numbers<[1], [0], [0], [1], [0, 0, 1, 1], [], []>, precision = #tpu.contract_precision<fp32>} : vector<8x128xf32>, vector<128x1xf32>, vector<8x1xf32> -> vector<8x1xf32>
    %c0_6 = arith.constant 0 : index
    %c0_7 = arith.constant 0 : index
    %11 = vector.load %arg4[%c0_6, %c0_7] : memref<128x1xf32, #tpu.memory_space<vmem>>, vector<128x1xf32>
    %cst_8 = arith.constant dense<0.000000e+00> : vector<8x1xf32>
    %12 = tpu.matmul %6, %11, %cst_8 {dimension_numbers = #tpu.dot_dimension_numbers<[1], [0], [0], [1], [0, 0, 1, 1], [], []>, precision = #tpu.contract_precision<fp32>} : vector<8x128xf32>, vector<128x1xf32>, vector<8x1xf32> -> vector<8x1xf32>
    %13 = arith.addf %10, %12 : vector<8x1xf32>
    %cst_9 = arith.constant 5.000000e-01 : f32
    %14 = vector.broadcast %cst_9 : f32 to vector<8x1xf32>
    %15 = arith.mulf %14, %13 : vector<8x1xf32>
    %16 = arith.subf %8, %15 : vector<8x1xf32>
    %c0_10 = arith.constant 0 : index
    %c0_11 = arith.constant 0 : index
    %17 = vector.load %arg5[%c0_10, %c0_11] : memref<8x1xf32, #tpu.memory_space<vmem>>, vector<8x1xf32>
    tpu.vector_store %arg5[%c0_10, %c0_11], %16 {strides = array<i32>} : memref<8x1xf32, #tpu.memory_space<vmem>>, vector<8x1xf32>,
    return
  }
  func.func @transform_0(%arg0: i32) -> (i32, i32) {
    %c0_i32 = arith.constant 0 : i32
    %c0_i32_0 = arith.constant 0 : i32
    return %arg0, %c0_i32 : i32, i32
  }
  func.func @transform_1(%arg0: i32) -> (i32, i32) {
    %c0_i32 = arith.constant 0 : i32
    %c0_i32_0 = arith.constant 0 : i32
    %c0_i32_1 = arith.constant 0 : i32
    return %c0_i32, %c0_i32_0 : i32, i32
  }
  func.func @transform_2(%arg0: i32) -> (i32, i32) {
    %c0_i32 = arith.constant 0 : i32
    %c0_i32_0 = arith.constant 0 : i32
    %c0_i32_1 = arith.constant 0 : i32
    return %c0_i32, %c0_i32_0 : i32, i32
  }
  func.func @transform_3(%arg0: i32) -> (i32, i32) {
    %c0_i32 = arith.constant 0 : i32
    %c0_i32_0 = arith.constant 0 : i32
    %c0_i32_1 = arith.constant 0 : i32
    return %c0_i32, %c0_i32_0 : i32, i32
  }
  func.func @transform_4(%arg0: i32) -> (i32, i32) {
    %c0_i32 = arith.constant 0 : i32
    %c0_i32_0 = arith.constant 0 : i32
    return %arg0, %c0_i32 : i32, i32
  }
}

</mosaic_0001>

<llo_original>
// kernel: tpu_custom_call.1
$region0: #{tpu_custom_call.1}
  #allocation0 [shape = 'u32[]', space=smem, size = 0x4, offset = 0x4, fixed_abs, tag = 'smem constant byte address 0x4 - core index']
  #allocation1 [shape = 'u32[72,128]{1,0:T(1,128)}', space=vmem, size = 0x9000, scoped, tag = 'internal scratch']
  %s0 = inlined_call_operand.vmem [shape: f32[8,128], index: 0, kind: input, shape index: {}]
  %s1 = inlined_call_operand.vmem [shape: f32[128,1], index: 1, kind: input, shape index: {}]
  %s2 = inlined_call_operand.vmem [shape: f32[128,1], index: 2, kind: input, shape index: {}]
  %s3 = inlined_call_operand.vmem [shape: f32[128,1], index: 3, kind: input, shape index: {}]
  %s4 = inlined_call_operand.vmem [shape: f32[8,1], index: 4, kind: output, shape index: {}]
  %s5 = sld [smem:[#allocation0]]
  $region26: #{tpu_custom_call.1} parent=0
    _
  %s7 = ssub.s32 1, %s5
  %s8 = scalar_select 0, %s7, %s5
  // Predicated region
  $region2: #{tpu_custom_call.1} parent=0 // pred_check
    _
  $region3: #{tpu_custom_call.1} parent=0 // pred_check_branch
    %10 = sbr.rel (0) target = $region5
  $region4: #{tpu_custom_call.1} parent=0 // pred_region
    _
  $region5: #{tpu_custom_call.1} parent=0 // pred_fallthru
    _
  // Predicated region
  $region6: #{tpu_custom_call.1} parent=0 // pred_check
    _
  $region7: #{tpu_custom_call.1} parent=0 // pred_check_branch
    %12 = sbr.rel (0) target = $region9
  $region8: #{tpu_custom_call.1} parent=0 // pred_region
    _
  $region9: #{tpu_custom_call.1} parent=0 // pred_fallthru
    _
  // Predicated region
  $region10: #{tpu_custom_call.1} parent=0 // pred_check
    _
  $region11: #{tpu_custom_call.1} parent=0 // pred_check_branch
    %14 = sbr.rel (0) target = $region13
  $region12: #{tpu_custom_call.1} parent=0 // pred_region
    _
  $region13: #{tpu_custom_call.1} parent=0 // pred_fallthru
    _
  // Predicated region
  $region14: #{tpu_custom_call.1} parent=0 // pred_check
    _
  $region15: #{tpu_custom_call.1} parent=0 // pred_check_branch
    %16 = sbr.rel (0) target = $region17
  $region16: #{tpu_custom_call.1} parent=0 // pred_region
    _
  $region17: #{tpu_custom_call.1} parent=0 // pred_fallthru
    _
  %v17 = vld [vmem:[%s0] sm:$0xff]
  %18 = vrot.lane.b32.xlu0 %v17, 127
  %v19 = vpop.permute.xlu0 %18
  %20 = vrot.lane.b32.xlu0 %v17, 112
  %v21 = vpop.permute.xlu0 %20
  %v22 = vsub.f32 %v17, %v19
  %v23 = vand.u32 2147483647, %v22
  %v24 = vsub.f32 %v17, %v21
  %v25 = vand.u32 2147483647, %v24
  %v26 = vld [vmem:[%s1] sm:$0xff]
  %v27 = vld [vmem:[%s1 + $0x8] sm:$0xff]
  %v28 = vld [vmem:[%s1 + $0x10] sm:$0xff]
  %v29 = vld [vmem:[%s1 + $0x18] sm:$0xff]
  %v30 = vld [vmem:[%s1 + $0x20] sm:$0xff]
  %v31 = vld [vmem:[%s1 + $0x28] sm:$0xff]
  %v32 = vld [vmem:[%s1 + $0x30] sm:$0xff]
  %v33 = vld [vmem:[%s1 + $0x38] sm:$0xff]
  %v34 = vld [vmem:[%s1 + $0x40] sm:$0xff]
  %v35 = vld [vmem:[%s1 + $0x48] sm:$0xff]
  %v36 = vld [vmem:[%s1 + $0x50] sm:$0xff]
  %v37 = vld [vmem:[%s1 + $0x58] sm:$0xff]
  %v38 = vld [vmem:[%s1 + $0x60] sm:$0xff]
  %v39 = vld [vmem:[%s1 + $0x68] sm:$0xff]
  %v40 = vld [vmem:[%s1 + $0x70] sm:$0xff]
  %v41 = vld [vmem:[%s1 + $0x78] sm:$0xff]
  %v42 = vand.u32 %v41, 4294901760
  %43 = vmatpush.msra.mxu0 %v42
  %v44 = vand.u32 %v40, 4294901760
  %45 = vmatpush.msra.mxu0 %v44
  %v46 = vand.u32 %v39, 4294901760
  %47 = vmatpush.msra.mxu0 %v46
  %v48 = vand.u32 %v38, 4294901760
  %49 = vmatpush.msra.mxu0 %v48
  %v50 = vand.u32 %v37, 4294901760
  %51 = vmatpush.msra.mxu0 %v50
  %v52 = vand.u32 %v36, 4294901760
  %53 = vmatpush.msra.mxu0 %v52
  %v54 = vand.u32 %v35, 4294901760
  %55 = vmatpush.msra.mxu0 %v54
  %v56 = vand.u32 %v34, 4294901760
  %57 = vmatpush.msra.mxu0 %v56
  %v58 = vand.u32 %v33, 4294901760
  %59 = vmatpush.msra.mxu0 %v58
  %v60 = vand.u32 %v32, 4294901760
  %61 = vmatpush.msra.mxu0 %v60
  %v62 = vand.u32 %v31, 4294901760
  %63 = vmatpush.msra.mxu0 %v62
  %v64 = vand.u32 %v30, 4294901760
  %65 = vmatpush.msra.mxu0 %v64
  %v66 = vand.u32 %v29, 4294901760
  %67 = vmatpush.msra.mxu0 %v66
  %v68 = vand.u32 %v28, 4294901760
  %69 = vmatpush.msra.mxu0 %v68
  %v70 = vand.u32 %v27, 4294901760
  %71 = vmatpush.msra.mxu0 %v70
  %v72 = vand.u32 %v26, 4294901760
  %73 = vmatpush.msra.mxu0 %v72
  %v74 = vand.u32 %v17, 4294901760
  %v75 = vsub.f32 %v17, %v74
  %v76 = vand.u32 %v75, 4294901760
  %v77 = vsub.f32 %v75, %v76
  %v78 = vand.u32 %v77, 4294901760
  %79 = vmatmul.f32.gmra.mxu0 %v78
  %v80 = vpop.f32.mrf.mxu0
  %v81 = vadd.f32 0.0, %v80
  %82 = vdwg.mxu0
  %v83 = vand.u32 %v41, 4294901760
  %v84 = vsub.f32 %v41, %v83
  %v85 = vand.u32 %v84, 4294901760
  %v86 = vsub.f32 %v84, %v85
  %v87 = vand.u32 %v86, 4294901760
  %88 = vmatpush.msra.mxu0 %v87
  %v89 = vand.u32 %v40, 4294901760
  %v90 = vsub.f32 %v40, %v89
  %v91 = vand.u32 %v90, 4294901760
  %v92 = vsub.f32 %v90, %v91
  %v93 = vand.u32 %v92, 4294901760
  %94 = vmatpush.msra.mxu0 %v93
  %v95 = vand.u32 %v39, 4294901760
  %v96 = vsub.f32 %v39, %v95
  %v97 = vand.u32 %v96, 4294901760
  %v98 = vsub.f32 %v96, %v97
  %v99 = vand.u32 %v98, 4294901760
  %100 = vmatpush.msra.mxu0 %v99
  %v101 = vand.u32 %v38, 4294901760
  %v102 = vsub.f32 %v38, %v101
  %v103 = vand.u32 %v102, 4294901760
  %v104 = vsub.f32 %v102, %v103
  %v105 = vand.u32 %v104, 4294901760
  %106 = vmatpush.msra.mxu0 %v105
  %v107 = vand.u32 %v37, 4294901760
  %v108 = vsub.f32 %v37, %v107
  %v109 = vand.u32 %v108, 4294901760
  %v110 = vsub.f32 %v108, %v109
  %v111 = vand.u32 %v110, 4294901760
  %112 = vmatpush.msra.mxu0 %v111
  %v113 = vand.u32 %v36, 4294901760
  %v114 = vsub.f32 %v36, %v113
  %v115 = vand.u32 %v114, 4294901760
  %v116 = vsub.f32 %v114, %v115
  %v117 = vand.u32 %v116, 4294901760
  %118 = vmatpush.msra.mxu0 %v117
  %v119 = vand.u32 %v35, 4294901760
  %v120 = vsub.f32 %v35, %v119
  %v121 = vand.u32 %v120, 4294901760
  %v122 = vsub.f32 %v120, %v121
  %v123 = vand.u32 %v122, 4294901760
  %124 = vmatpush.msra.mxu0 %v123
  %v125 = vand.u32 %v34, 4294901760
  %v126 = vsub.f32 %v34, %v125
  %v127 = vand.u32 %v126, 4294901760
  %v128 = vsub.f32 %v126, %v127
  %v129 = vand.u32 %v128, 4294901760
  %130 = vmatpush.msra.mxu0 %v129
  %v131 = vand.u32 %v33, 4294901760
  %v132 = vsub.f32 %v33, %v131
  %v133 = vand.u32 %v132, 4294901760
  %v134 = vsub.f32 %v132, %v133
  %v135 = vand.u32 %v134, 4294901760
  %136 = vmatpush.msra.mxu0 %v135
  %v137 = vand.u32 %v32, 4294901760
  %v138 = vsub.f32 %v32, %v137
  %v139 = vand.u32 %v138, 4294901760
  %v140 = vsub.f32 %v138, %v139
  %v141 = vand.u32 %v140, 4294901760
  %142 = vmatpush.msra.mxu0 %v141
  %v143 = vand.u32 %v31, 4294901760
  %v144 = vsub.f32 %v31, %v143
  %v145 = vand.u32 %v144, 4294901760
  %v146 = vsub.f32 %v144, %v145
  %v147 = vand.u32 %v146, 4294901760
  %148 = vmatpush.msra.mxu0 %v147
  %v149 = vand.u32 %v30, 4294901760
  %v150 = vsub.f32 %v30, %v149
  %v151 = vand.u32 %v150, 4294901760
  %v152 = vsub.f32 %v150, %v151
  %v153 = vand.u32 %v152, 4294901760
  %154 = vmatpush.msra.mxu0 %v153
  %v155 = vand.u32 %v29, 4294901760
  %v156 = vsub.f32 %v29, %v155
  %v157 = vand.u32 %v156, 4294901760
  %v158 = vsub.f32 %v156, %v157
  %v159 = vand.u32 %v158, 4294901760
  %160 = vmatpush.msra.mxu0 %v159
  %v161 = vand.u32 %v28, 4294901760
  %v162 = vsub.f32 %v28, %v161
  %v163 = vand.u32 %v162, 4294901760
  %v164 = vsub.f32 %v162, %v163
  %v165 = vand.u32 %v164, 4294901760
  %166 = vmatpush.msra.mxu0 %v165
  %v167 = vand.u32 %v27, 4294901760
  %v168 = vsub.f32 %v27, %v167
  %v169 = vand.u32 %v168, 4294901760
  %v170 = vsub.f32 %v168, %v169
  %v171 = vand.u32 %v170, 4294901760
  %172 = vmatpush.msra.mxu0 %v171
  %v173 = vand.u32 %v26, 4294901760
  %v174 = vsub.f32 %v26, %v173
  %v175 = vand.u32 %v174, 4294901760
  %v176 = vsub.f32 %v174, %v175
  %v177 = vand.u32 %v176, 4294901760
  %178 = vmatpush.msra.mxu0 %v177
  %v179 = vand.u32 %v17, 4294901760
  %180 = vmatmul.f32.gmra.mxu0 %v179
  %v181 = vpop.f32.mrf.mxu0
  %v182 = vadd.f32 %v81, %v181
  %183 = vdwg.mxu0
  %v184 = vand.u32 %v41, 4294901760
  %v185 = vsub.f32 %v41, %v184
  %186 = vmatpush.msra.mxu0 %v185
  %v187 = vand.u32 %v40, 4294901760
  %v188 = vsub.f32 %v40, %v187
  %189 = vmatpush.msra.mxu0 %v188
  %v190 = vand.u32 %v39, 4294901760
  %v191 = vsub.f32 %v39, %v190
  %192 = vmatpush.msra.mxu0 %v191
  %v193 = vand.u32 %v38, 4294901760
  %v194 = vsub.f32 %v38, %v193
  %195 = vmatpush.msra.mxu0 %v194
  %v196 = vand.u32 %v37, 4294901760
  %v197 = vsub.f32 %v37, %v196
  %198 = vmatpush.msra.mxu0 %v197
  %v199 = vand.u32 %v36, 4294901760
  %v200 = vsub.f32 %v36, %v199
  %201 = vmatpush.msra.mxu0 %v200
  %v202 = vand.u32 %v35, 4294901760
  %v203 = vsub.f32 %v35, %v202
  %204 = vmatpush.msra.mxu0 %v203
  %v205 = vand.u32 %v34, 4294901760
  %v206 = vsub.f32 %v34, %v205
  %207 = vmatpush.msra.mxu0 %v206
  %v208 = vand.u32 %v33, 4294901760
  %v209 = vsub.f32 %v33, %v208
  %210 = vmatpush.msra.mxu0 %v209
  %v211 = vand.u32 %v32, 4294901760
  %v212 = vsub.f32 %v32, %v211
  %213 = vmatpush.msra.mxu0 %v212
  %v214 = vand.u32 %v31, 4294901760
  %v215 = vsub.f32 %v31, %v214
  %216 = vmatpush.msra.mxu0 %v215
  %v217 = vand.u32 %v30, 4294901760
  %v218 = vsub.f32 %v30, %v217
  %219 = vmatpush.msra.mxu0 %v218
  %v220 = vand.u32 %v29, 4294901760
  %v221 = vsub.f32 %v29, %v220
  %222 = vmatpush.msra.mxu0 %v221
  %v223 = vand.u32 %v28, 4294901760
  %v224 = vsub.f32 %v28, %v223
  %225 = vmatpush.msra.mxu0 %v224
  %v226 = vand.u32 %v27, 4294901760
  %v227 = vsub.f32 %v27, %v226
  %228 = vmatpush.msra.mxu0 %v227
  %v229 = vand.u32 %v26, 4294901760
  %v230 = vsub.f32 %v26, %v229
  %231 = vmatpush.msra.mxu0 %v230
  %v232 = vand.u32 %v17, 4294901760
  %v233 = vsub.f32 %v17, %v232
  %234 = vmatmul.f32.gmra.mxu0 %v233
  %v235 = vpop.f32.mrf.mxu0
  %v236 = vadd.f32 %v182, %v235
  %237 = vdwg.mxu0
  %v238 = vand.u32 %v41, 4294901760
  %239 = vmatpush.msra.mxu0 %v238
  %v240 = vand.u32 %v40, 4294901760
  %241 = vmatpush.msra.mxu0 %v240
  %v242 = vand.u32 %v39, 4294901760
  %243 = vmatpush.msra.mxu0 %v242
  %v244 = vand.u32 %v38, 4294901760
  %245 = vmatpush.msra.mxu0 %v244
  %v246 = vand.u32 %v37, 4294901760
  %247 = vmatpush.msra.mxu0 %v246
  %v248 = vand.u32 %v36, 4294901760
  %249 = vmatpush.msra.mxu0 %v248
  %v250 = vand.u32 %v35, 4294901760
  %251 = vmatpush.msra.mxu0 %v250
  %v252 = vand.u32 %v34, 4294901760
  %253 = vmatpush.msra.mxu0 %v252
  %v254 = vand.u32 %v33, 4294901760
  %255 = vmatpush.msra.mxu0 %v254
  %v256 = vand.u32 %v32, 4294901760
  %257 = vmatpush.msra.mxu0 %v256
  %v258 = vand.u32 %v31, 4294901760
  %259 = vmatpush.msra.mxu0 %v258
  %v260 = vand.u32 %v30, 4294901760
  %261 = vmatpush.msra.mxu0 %v260
  %v262 = vand.u32 %v29, 4294901760
  %263 = vmatpush.msra.mxu0 %v262
  %v264 = vand.u32 %v28, 4294901760
  %265 = vmatpush.msra.mxu0 %v264
  %v266 = vand.u32 %v27, 4294901760
  %267 = vmatpush.msra.mxu0 %v266
  %v268 = vand.u32 %v26, 4294901760
  %269 = vmatpush.msra.mxu0 %v268
  %v270 = vand.u32 %v17, 4294901760
  %v271 = vsub.f32 %v17, %v270
  %v272 = vand.u32 %v271, 4294901760
  %273 = vmatmul.f32.gmra.mxu0 %v272
  %v274 = vpop.f32.mrf.mxu0
  %v275 = vadd.f32 %v236, %v274
  %276 = vdwg.mxu0
  %v277 = vand.u32 %v41, 4294901760
  %v278 = vsub.f32 %v41, %v277
  %v279 = vand.u32 %v278, 4294901760
  %280 = vmatpush.msra.mxu0 %v279
  %v281 = vand.u32 %v40, 4294901760
  %v282 = vsub.f32 %v40, %v281
  %v283 = vand.u32 %v282, 4294901760
  %284 = vmatpush.msra.mxu0 %v283
  %v285 = vand.u32 %v39, 4294901760
  %v286 = vsub.f32 %v39, %v285
  %v287 = vand.u32 %v286, 4294901760
  %288 = vmatpush.msra.mxu0 %v287
  %v289 = vand.u32 %v38, 4294901760
  %v290 = vsub.f32 %v38, %v289
  %v291 = vand.u32 %v290, 4294901760
  %292 = vmatpush.msra.mxu0 %v291
  %v293 = vand.u32 %v37, 4294901760
  %v294 = vsub.f32 %v37, %v293
  %v295 = vand.u32 %v294, 4294901760
  %296 = vmatpush.msra.mxu0 %v295
  %v297 = vand.u32 %v36, 4294901760
  %v298 = vsub.f32 %v36, %v297
  %v299 = vand.u32 %v298, 4294901760
  %300 = vmatpush.msra.mxu0 %v299
  %v301 = vand.u32 %v35, 4294901760
  %v302 = vsub.f32 %v35, %v301
  %v303 = vand.u32 %v302, 4294901760
  %304 = vmatpush.msra.mxu0 %v303
  %v305 = vand.u32 %v34, 4294901760
  %v306 = vsub.f32 %v34, %v305
  %v307 = vand.u32 %v306, 4294901760
  %308 = vmatpush.msra.mxu0 %v307
  %v309 = vand.u32 %v33, 4294901760
  %v310 = vsub.f32 %v33, %v309
  %v311 = vand.u32 %v310, 4294901760
  %312 = vmatpush.msra.mxu0 %v311
  %v313 = vand.u32 %v32, 4294901760
  %v314 = vsub.f32 %v32, %v313
  %v315 = vand.u32 %v314, 4294901760
  %316 = vmatpush.msra.mxu0 %v315
  %v317 = vand.u32 %v31, 4294901760
  %v318 = vsub.f32 %v31, %v317
  %v319 = vand.u32 %v318, 4294901760
  %320 = vmatpush.msra.mxu0 %v319
  %v321 = vand.u32 %v30, 4294901760
  %v322 = vsub.f32 %v30, %v321
  %v323 = vand.u32 %v322, 4294901760
  %324 = vmatpush.msra.mxu0 %v323
  %v325 = vand.u32 %v29, 4294901760
  %v326 = vsub.f32 %v29, %v325
  %v327 = vand.u32 %v326, 4294901760
  %328 = vmatpush.msra.mxu0 %v327
  %v329 = vand.u32 %v28, 4294901760
  %v330 = vsub.f32 %v28, %v329
  %v331 = vand.u32 %v330, 4294901760
  %332 = vmatpush.msra.mxu0 %v331
  %v333 = vand.u32 %v27, 4294901760
  %v334 = vsub.f32 %v27, %v333
  %v335 = vand.u32 %v334, 4294901760
  %336 = vmatpush.msra.mxu0 %v335
  %v337 = vand.u32 %v26, 4294901760
  %v338 = vsub.f32 %v26, %v337
  %v339 = vand.u32 %v338, 4294901760
  %340 = vmatpush.msra.mxu0 %v339
  %v341 = vand.u32 %v17, 4294901760
  %342 = vmatmul.f32.gmra.mxu0 %v341
  %v343 = vpop.f32.mrf.mxu0
  %v344 = vadd.f32 %v275, %v343
  %345 = vdwg.mxu0
  %v346 = vand.u32 %v41, 4294901760
  %347 = vmatpush.msra.mxu0 %v346
  %v348 = vand.u32 %v40, 4294901760
  %349 = vmatpush.msra.mxu0 %v348
  %v350 = vand.u32 %v39, 4294901760
  %351 = vmatpush.msra.mxu0 %v350
  %v352 = vand.u32 %v38, 4294901760
  %353 = vmatpush.msra.mxu0 %v352
  %v354 = vand.u32 %v37, 4294901760
  %355 = vmatpush.msra.mxu0 %v354
  %v356 = vand.u32 %v36, 4294901760
  %357 = vmatpush.msra.mxu0 %v356
  %v358 = vand.u32 %v35, 4294901760
  %359 = vmatpush.msra.mxu0 %v358
  %v360 = vand.u32 %v34, 4294901760
  %361 = vmatpush.msra.mxu0 %v360
  %v362 = vand.u32 %v33, 4294901760
  %363 = vmatpush.msra.mxu0 %v362
  %v364 = vand.u32 %v32, 4294901760
  %365 = vmatpush.msra.mxu0 %v364
  %v366 = vand.u32 %v31, 4294901760
  %367 = vmatpush.msra.mxu0 %v366
  %v368 = vand.u32 %v30, 4294901760
  %369 = vmatpush.msra.mxu0 %v368
  %v370 = vand.u32 %v29, 4294901760
  %371 = vmatpush.msra.mxu0 %v370
  %v372 = vand.u32 %v28, 4294901760
  %373 = vmatpush.msra.mxu0 %v372
  %v374 = vand.u32 %v27, 4294901760
  %375 = vmatpush.msra.mxu0 %v374
  %v376 = vand.u32 %v26, 4294901760
  %377 = vmatpush.msra.mxu0 %v376
  %v378 = vand.u32 %v17, 4294901760
  %379 = vmatmul.f32.gmra.mxu0 %v378
  %v380 = vpop.f32.mrf.mxu0
  %v381 = vadd.f32 %v344, %v380
  %382 = vdwg.mxu0
  %v383 = vld [vmem:[%s2] sm:$0xff]
  %v384 = vld [vmem:[%s2 + $0x8] sm:$0xff]
  %v385 = vld [vmem:[%s2 + $0x10] sm:$0xff]
  %v386 = vld [vmem:[%s2 + $0x18] sm:$0xff]
  %v387 = vld [vmem:[%s2 + $0x20] sm:$0xff]
  %v388 = vld [vmem:[%s2 + $0x28] sm:$0xff]
  %v389 = vld [vmem:[%s2 + $0x30] sm:$0xff]
  %v390 = vld [vmem:[%s2 + $0x38] sm:$0xff]
  %v391 = vld [vmem:[%s2 + $0x40] sm:$0xff]
  %v392 = vld [vmem:[%s2 + $0x48] sm:$0xff]
  %v393 = vld [vmem:[%s2 + $0x50] sm:$0xff]
  %v394 = vld [vmem:[%s2 + $0x58] sm:$0xff]
  %v395 = vld [vmem:[%s2 + $0x60] sm:$0xff]
  %v396 = vld [vmem:[%s2 + $0x68] sm:$0xff]
  %v397 = vld [vmem:[%s2 + $0x70] sm:$0xff]
  %v398 = vld [vmem:[%s2 + $0x78] sm:$0xff]
  %v399 = vld [vmem:[%s3] sm:$0xff]
  %v400 = vld [vmem:[%s3 + $0x8] sm:$0xff]
  %v401 = vld [vmem:[%s3 + $0x10] sm:$0xff]
  %v402 = vld [vmem:[%s3 + $0x18] sm:$0xff]
  %v403 = vld [vmem:[%s3 + $0x20] sm:$0xff]
  %v404 = vld [vmem:[%s3 + $0x28] sm:$0xff]
  %v405 = vld [vmem:[%s3 + $0x30] sm:$0xff]
  %v406 = vld [vmem:[%s3 + $0x38] sm:$0xff]
  %v407 = vld [vmem:[%s3 + $0x40] sm:$0xff]
  %v408 = vld [vmem:[%s3 + $0x48] sm:$0xff]
  %v409 = vld [vmem:[%s3 + $0x50] sm:$0xff]
  %v410 = vld [vmem:[%s3 + $0x58] sm:$0xff]
  %v411 = vld [vmem:[%s3 + $0x60] sm:$0xff]
  %v412 = vld [vmem:[%s3 + $0x68] sm:$0xff]
  %v413 = vld [vmem:[%s3 + $0x70] sm:$0xff]
  %v414 = vld [vmem:[%s3 + $0x78] sm:$0xff]
  %v415 = vand.u32 %v414, 4294901760
  %416 = vmatpush.msra.mxu0 %v415
  %v417 = vand.u32 %v413, 4294901760
  %418 = vmatpush.msra.mxu0 %v417
  %v419 = vand.u32 %v412, 4294901760
  %420 = vmatpush.msra.mxu0 %v419
  %v421 = vand.u32 %v411, 4294901760
  %422 = vmatpush.msra.mxu0 %v421
  %v423 = vand.u32 %v410, 4294901760
  %424 = vmatpush.msra.mxu0 %v423
  %v425 = vand.u32 %v409, 4294901760
  %426 = vmatpush.msra.mxu0 %v425
  %v427 = vand.u32 %v408, 4294901760
  %428 = vmatpush.msra.mxu0 %v427
  %v429 = vand.u32 %v407, 4294901760
  %430 = vmatpush.msra.mxu0 %v429
  %v431 = vand.u32 %v406, 4294901760
  %432 = vmatpush.msra.mxu0 %v431
  %v433 = vand.u32 %v405, 4294901760
  %434 = vmatpush.msra.mxu0 %v433
  %v435 = vand.u32 %v404, 4294901760
  %436 = vmatpush.msra.mxu0 %v435
  %v437 = vand.u32 %v403, 4294901760
  %438 = vmatpush.msra.mxu0 %v437
  %v439 = vand.u32 %v402, 4294901760
  %440 = vmatpush.msra.mxu0 %v439
  %v441 = vand.u32 %v401, 4294901760
  %442 = vmatpush.msra.mxu0 %v441
  %v443 = vand.u32 %v400, 4294901760
  %444 = vmatpush.msra.mxu0 %v443
  %v445 = vand.u32 %v399, 4294901760
  %446 = vmatpush.msra.mxu0 %v445
  %v447 = vand.u32 %v25, 4294901760
  %v448 = vsub.f32 %v25, %v447
  %v449 = vand.u32 %v448, 4294901760
  %v450 = vsub.f32 %v448, %v449
  %v451 = vand.u32 %v450, 4294901760
  %452 = vmatmul.f32.gmra.mxu0 %v451
  %v453 = vpop.f32.mrf.mxu0
  %v454 = vadd.f32 0.0, %v453
  %455 = vdwg.mxu0
  %v456 = vand.u32 %v414, 4294901760
  %v457 = vsub.f32 %v414, %v456
  %v458 = vand.u32 %v457, 4294901760
  %v459 = vsub.f32 %v457, %v458
  %v460 = vand.u32 %v459, 4294901760
  %461 = vmatpush.msra.mxu0 %v460
  %v462 = vand.u32 %v413, 4294901760
  %v463 = vsub.f32 %v413, %v462
  %v464 = vand.u32 %v463, 4294901760
  %v465 = vsub.f32 %v463, %v464
  %v466 = vand.u32 %v465, 4294901760
  %467 = vmatpush.msra.mxu0 %v466
  %v468 = vand.u32 %v412, 4294901760
  %v469 = vsub.f32 %v412, %v468
  %v470 = vand.u32 %v469, 4294901760
  %v471 = vsub.f32 %v469, %v470
  %v472 = vand.u32 %v471, 4294901760
  %473 = vmatpush.msra.mxu0 %v472
  %v474 = vand.u32 %v411, 4294901760
  %v475 = vsub.f32 %v411, %v474
  %v476 = vand.u32 %v475, 4294901760
  %v477 = vsub.f32 %v475, %v476
  %v478 = vand.u32 %v477, 4294901760
  %479 = vmatpush.msra.mxu0 %v478
  %v480 = vand.u32 %v410, 4294901760
  %v481 = vsub.f32 %v410, %v480
  %v482 = vand.u32 %v481, 4294901760
  %v483 = vsub.f32 %v481, %v482
  %v484 = vand.u32 %v483, 4294901760
  %485 = vmatpush.msra.mxu0 %v484
  %v486 = vand.u32 %v409, 4294901760
  %v487 = vsub.f32 %v409, %v486
  %v488 = vand.u32 %v487, 4294901760
  %v489 = vsub.f32 %v487, %v488
  %v490 = vand.u32 %v489, 4294901760
  %491 = vmatpush.msra.mxu0 %v490
  %v492 = vand.u32 %v408, 4294901760
  %v493 = vsub.f32 %v408, %v492
  %v494 = vand.u32 %v493, 4294901760
  %v495 = vsub.f32 %v493, %v494
  %v496 = vand.u32 %v495, 4294901760
  %497 = vmatpush.msra.mxu0 %v496
  %v498 = vand.u32 %v407, 4294901760
  %v499 = vsub.f32 %v407, %v498
  %v500 = vand.u32 %v499, 4294901760
  %v501 = vsub.f32 %v499, %v500
  %v502 = vand.u32 %v501, 4294901760
  %503 = vmatpush.msra.mxu0 %v502
  %v504 = vand.u32 %v406, 4294901760
  %v505 = vsub.f32 %v406, %v504
  %v506 = vand.u32 %v505, 4294901760
  %v507 = vsub.f32 %v505, %v506
  %v508 = vand.u32 %v507, 4294901760
  %509 = vmatpush.msra.mxu0 %v508
  %v510 = vand.u32 %v405, 4294901760
  %v511 = vsub.f32 %v405, %v510
  %v512 = vand.u32 %v511, 4294901760
  %v513 = vsub.f32 %v511, %v512
  %v514 = vand.u32 %v513, 4294901760
  %515 = vmatpush.msra.mxu0 %v514
  %v516 = vand.u32 %v404, 4294901760
  %v517 = vsub.f32 %v404, %v516
  %v518 = vand.u32 %v517, 4294901760
  %v519 = vsub.f32 %v517, %v518
  %v520 = vand.u32 %v519, 4294901760
  %521 = vmatpush.msra.mxu0 %v520
  %v522 = vand.u32 %v403, 4294901760
  %v523 = vsub.f32 %v403, %v522
  %v524 = vand.u32 %v523, 4294901760
  %v525 = vsub.f32 %v523, %v524
  %v526 = vand.u32 %v525, 4294901760
  %527 = vmatpush.msra.mxu0 %v526
  %v528 = vand.u32 %v402, 4294901760
  %v529 = vsub.f32 %v402, %v528
  %v530 = vand.u32 %v529, 4294901760
  %v531 = vsub.f32 %v529, %v530
  %v532 = vand.u32 %v531, 4294901760
  %533 = vmatpush.msra.mxu0 %v532
  %v534 = vand.u32 %v401, 4294901760
  %v535 = vsub.f32 %v401, %v534
  %v536 = vand.u32 %v535, 4294901760
  %v537 = vsub.f32 %v535, %v536
  %v538 = vand.u32 %v537, 4294901760
  %539 = vmatpush.msra.mxu0 %v538
  %v540 = vand.u32 %v400, 4294901760
  %v541 = vsub.f32 %v400, %v540
  %v542 = vand.u32 %v541, 4294901760
  %v543 = vsub.f32 %v541, %v542
  %v544 = vand.u32 %v543, 4294901760
  %545 = vmatpush.msra.mxu0 %v544
  %v546 = vand.u32 %v399, 4294901760
  %v547 = vsub.f32 %v399, %v546
  %v548 = vand.u32 %v547, 4294901760
  %v549 = vsub.f32 %v547, %v548
  %v550 = vand.u32 %v549, 4294901760
  %551 = vmatpush.msra.mxu0 %v550
  %v552 = vand.u32 %v25, 4294901760
  %553 = vmatmul.f32.gmra.mxu0 %v552
  %v554 = vpop.f32.mrf.mxu0
  %v555 = vadd.f32 %v454, %v554
  %556 = vdwg.mxu0
  %v557 = vand.u32 %v414, 4294901760
  %v558 = vsub.f32 %v414, %v557
  %559 = vmatpush.msra.mxu0 %v558
  %v560 = vand.u32 %v413, 4294901760
  %v561 = vsub.f32 %v413, %v560
  %562 = vmatpush.msra.mxu0 %v561
  %v563 = vand.u32 %v412, 4294901760
  %v564 = vsub.f32 %v412, %v563
  %565 = vmatpush.msra.mxu0 %v564
  %v566 = vand.u32 %v411, 4294901760
  %v567 = vsub.f32 %v411, %v566
  %568 = vmatpush.msra.mxu0 %v567
  %v569 = vand.u32 %v410, 4294901760
  %v570 = vsub.f32 %v410, %v569
  %571 = vmatpush.msra.mxu0 %v570
  %v572 = vand.u32 %v409, 4294901760
  %v573 = vsub.f32 %v409, %v572
  %574 = vmatpush.msra.mxu0 %v573
  %v575 = vand.u32 %v408, 4294901760
  %v576 = vsub.f32 %v408, %v575
  %577 = vmatpush.msra.mxu0 %v576
  %v578 = vand.u32 %v407, 4294901760
  %v579 = vsub.f32 %v407, %v578
  %580 = vmatpush.msra.mxu0 %v579
  %v581 = vand.u32 %v406, 4294901760
  %v582 = vsub.f32 %v406, %v581
  %583 = vmatpush.msra.mxu0 %v582
  %v584 = vand.u32 %v405, 4294901760
  %v585 = vsub.f32 %v405, %v584
  %586 = vmatpush.msra.mxu0 %v585
  %v587 = vand.u32 %v404, 4294901760
  %v588 = vsub.f32 %v404, %v587
  %589 = vmatpush.msra.mxu0 %v588
  %v590 = vand.u32 %v403, 4294901760
  %v591 = vsub.f32 %v403, %v590
  %592 = vmatpush.msra.mxu0 %v591
  %v593 = vand.u32 %v402, 4294901760
  %v594 = vsub.f32 %v402, %v593
  %595 = vmatpush.msra.mxu0 %v594
  %v596 = vand.u32 %v401, 4294901760
  %v597 = vsub.f32 %v401, %v596
  %598 = vmatpush.msra.mxu0 %v597
  %v599 = vand.u32 %v400, 4294901760
  %v600 = vsub.f32 %v400, %v599
  %601 = vmatpush.msra.mxu0 %v600
  %v602 = vand.u32 %v399, 4294901760
  %v603 = vsub.f32 %v399, %v602
  %604 = vmatpush.msra.mxu0 %v603
  %v605 = vand.u32 %v25, 4294901760
  %v606 = vsub.f32 %v25, %v605
  %607 = vmatmul.f32.gmra.mxu0 %v606
  %v608 = vpop.f32.mrf.mxu0
  %v609 = vadd.f32 %v555, %v608
  %610 = vdwg.mxu0
  %v611 = vand.u32 %v414, 4294901760
  %612 = vmatpush.msra.mxu0 %v611
  %v613 = vand.u32 %v413, 4294901760
  %614 = vmatpush.msra.mxu0 %v613
  %v615 = vand.u32 %v412, 4294901760
  %616 = vmatpush.msra.mxu0 %v615
  %v617 = vand.u32 %v411, 4294901760
  %618 = vmatpush.msra.mxu0 %v617
  %v619 = vand.u32 %v410, 4294901760
  %620 = vmatpush.msra.mxu0 %v619
  %v621 = vand.u32 %v409, 4294901760
  %622 = vmatpush.msra.mxu0 %v621
  %v623 = vand.u32 %v408, 4294901760
  %624 = vmatpush.msra.mxu0 %v623
  %v625 = vand.u32 %v407, 4294901760
  %626 = vmatpush.msra.mxu0 %v625
  %v627 = vand.u32 %v406, 4294901760
  %628 = vmatpush.msra.mxu0 %v627
  %v629 = vand.u32 %v405, 4294901760
  %630 = vmatpush.msra.mxu0 %v629
  %v631 = vand.u32 %v404, 4294901760
  %632 = vmatpush.msra.mxu0 %v631
  %v633 = vand.u32 %v403, 4294901760
  %634 = vmatpush.msra.mxu0 %v633
  %v635 = vand.u32 %v402, 4294901760
  %636 = vmatpush.msra.mxu0 %v635
  %v637 = vand.u32 %v401, 4294901760
  %638 = vmatpush.msra.mxu0 %v637
  %v639 = vand.u32 %v400, 4294901760
  %640 = vmatpush.msra.mxu0 %v639
  %v641 = vand.u32 %v399, 4294901760
  %642 = vmatpush.msra.mxu0 %v641
  %v643 = vand.u32 %v25, 4294901760
  %v644 = vsub.f32 %v25, %v643
  %v645 = vand.u32 %v644, 4294901760
  %646 = vmatmul.f32.gmra.mxu0 %v645
  %v647 = vpop.f32.mrf.mxu0
  %v648 = vadd.f32 %v609, %v647
  %649 = vdwg.mxu0
  %v650 = vand.u32 %v414, 4294901760
  %v651 = vsub.f32 %v414, %v650
  %v652 = vand.u32 %v651, 4294901760
  %653 = vmatpush.msra.mxu0 %v652
  %v654 = vand.u32 %v413, 4294901760
  %v655 = vsub.f32 %v413, %v654
  %v656 = vand.u32 %v655, 4294901760
  %657 = vmatpush.msra.mxu0 %v656
  %v658 = vand.u32 %v412, 4294901760
  %v659 = vsub.f32 %v412, %v658
  %v660 = vand.u32 %v659, 4294901760
  %661 = vmatpush.msra.mxu0 %v660
  %v662 = vand.u32 %v411, 4294901760
  %v663 = vsub.f32 %v411, %v662
  %v664 = vand.u32 %v663, 4294901760
  %665 = vmatpush.msra.mxu0 %v664
  %v666 = vand.u32 %v410, 4294901760
  %v667 = vsub.f32 %v410, %v666
  %v668 = vand.u32 %v667, 4294901760
  %669 = vmatpush.msra.mxu0 %v668
  %v670 = vand.u32 %v409, 4294901760
  %v671 = vsub.f32 %v409, %v670
  %v672 = vand.u32 %v671, 4294901760
  %673 = vmatpush.msra.mxu0 %v672
  %v674 = vand.u32 %v408, 4294901760
  %v675 = vsub.f32 %v408, %v674
  %v676 = vand.u32 %v675, 4294901760
  %677 = vmatpush.msra.mxu0 %v676
  %v678 = vand.u32 %v407, 4294901760
  %v679 = vsub.f32 %v407, %v678
  %v680 = vand.u32 %v679, 4294901760
  %681 = vmatpush.msra.mxu0 %v680
  %v682 = vand.u32 %v406, 4294901760
  %v683 = vsub.f32 %v406, %v682
  %v684 = vand.u32 %v683, 4294901760
  %685 = vmatpush.msra.mxu0 %v684
  %v686 = vand.u32 %v405, 4294901760
  %v687 = vsub.f32 %v405, %v686
  %v688 = vand.u32 %v687, 4294901760
  %689 = vmatpush.msra.mxu0 %v688
  %v690 = vand.u32 %v404, 4294901760
  %v691 = vsub.f32 %v404, %v690
  %v692 = vand.u32 %v691, 4294901760
  %693 = vmatpush.msra.mxu0 %v692
  %v694 = vand.u32 %v403, 4294901760
  %v695 = vsub.f32 %v403, %v694
  %v696 = vand.u32 %v695, 4294901760
  %697 = vmatpush.msra.mxu0 %v696
  %v698 = vand.u32 %v402, 4294901760
  %v699 = vsub.f32 %v402, %v698
  %v700 = vand.u32 %v699, 4294901760
  %701 = vmatpush.msra.mxu0 %v700
  %v702 = vand.u32 %v401, 4294901760
  %v703 = vsub.f32 %v401, %v702
  %v704 = vand.u32 %v703, 4294901760
  %705 = vmatpush.msra.mxu0 %v704
  %v706 = vand.u32 %v400, 4294901760
  %v707 = vsub.f32 %v400, %v706
  %v708 = vand.u32 %v707, 4294901760
  %709 = vmatpush.msra.mxu0 %v708
  %v710 = vand.u32 %v399, 4294901760
  %v711 = vsub.f32 %v399, %v710
  %v712 = vand.u32 %v711, 4294901760
  %713 = vmatpush.msra.mxu0 %v712
  %v714 = vand.u32 %v25, 4294901760
  %715 = vmatmul.f32.gmra.mxu0 %v714
  %v716 = vpop.f32.mrf.mxu0
  %v717 = vadd.f32 %v648, %v716
  %718 = vdwg.mxu0
  %v719 = vand.u32 %v414, 4294901760
  %720 = vmatpush.msra.mxu0 %v719
  %v721 = vand.u32 %v413, 4294901760
  %722 = vmatpush.msra.mxu0 %v721
  %v723 = vand.u32 %v412, 4294901760
  %724 = vmatpush.msra.mxu0 %v723
  %v725 = vand.u32 %v411, 4294901760
  %726 = vmatpush.msra.mxu0 %v725
  %v727 = vand.u32 %v410, 4294901760
  %728 = vmatpush.msra.mxu0 %v727
  %v729 = vand.u32 %v409, 4294901760
  %730 = vmatpush.msra.mxu0 %v729
  %v731 = vand.u32 %v408, 4294901760
  %732 = vmatpush.msra.mxu0 %v731
  %v733 = vand.u32 %v407, 4294901760
  %734 = vmatpush.msra.mxu0 %v733
  %v735 = vand.u32 %v406, 4294901760
  %736 = vmatpush.msra.mxu0 %v735
  %v737 = vand.u32 %v405, 4294901760
  %738 = vmatpush.msra.mxu0 %v737
  %v739 = vand.u32 %v404, 4294901760
  %740 = vmatpush.msra.mxu0 %v739
  %v741 = vand.u32 %v403, 4294901760
  %742 = vmatpush.msra.mxu0 %v741
  %v743 = vand.u32 %v402, 4294901760
  %744 = vmatpush.msra.mxu0 %v743
  %v745 = vand.u32 %v401, 4294901760
  %746 = vmatpush.msra.mxu0 %v745
  %v747 = vand.u32 %v400, 4294901760
  %748 = vmatpush.msra.mxu0 %v747
  %v749 = vand.u32 %v399, 4294901760
  %750 = vmatpush.msra.mxu0 %v749
  %v751 = vand.u32 %v25, 4294901760
  %752 = vmatmul.f32.gmra.mxu0 %v751
  %v753 = vpop.f32.mrf.mxu0
  %v754 = vadd.f32 %v717, %v753
  %755 = vdwg.mxu0
  %v756 = vand.u32 %v398, 4294901760
  %757 = vmatpush.msra.mxu0 %v756
  %v758 = vand.u32 %v397, 4294901760
  %759 = vmatpush.msra.mxu0 %v758
  %v760 = vand.u32 %v396, 4294901760
  %761 = vmatpush.msra.mxu0 %v760
  %v762 = vand.u32 %v395, 4294901760
  %763 = vmatpush.msra.mxu0 %v762
  %v764 = vand.u32 %v394, 4294901760
  %765 = vmatpush.msra.mxu0 %v764
  %v766 = vand.u32 %v393, 4294901760
  %767 = vmatpush.msra.mxu0 %v766
  %v768 = vand.u32 %v392, 4294901760
  %769 = vmatpush.msra.mxu0 %v768
  %v770 = vand.u32 %v391, 4294901760
  %771 = vmatpush.msra.mxu0 %v770
  %v772 = vand.u32 %v390, 4294901760
  %773 = vmatpush.msra.mxu0 %v772
  %v774 = vand.u32 %v389, 4294901760
  %775 = vmatpush.msra.mxu0 %v774
  %v776 = vand.u32 %v388, 4294901760
  %777 = vmatpush.msra.mxu0 %v776
  %v778 = vand.u32 %v387, 4294901760
  %779 = vmatpush.msra.mxu0 %v778
  %v780 = vand.u32 %v386, 4294901760
  %781 = vmatpush.msra.mxu0 %v780
  %v782 = vand.u32 %v385, 4294901760
  %783 = vmatpush.msra.mxu0 %v782
  %v784 = vand.u32 %v384, 4294901760
  %785 = vmatpush.msra.mxu0 %v784
  %v786 = vand.u32 %v383, 4294901760
  %787 = vmatpush.msra.mxu0 %v786
  %v788 = vand.u32 %v23, 4294901760
  %v789 = vsub.f32 %v23, %v788
  %v790 = vand.u32 %v789, 4294901760
  %v791 = vsub.f32 %v789, %v790
  %v792 = vand.u32 %v791, 4294901760
  %793 = vmatmul.f32.gmra.mxu0 %v792
  %v794 = vpop.f32.mrf.mxu0
  %v795 = vadd.f32 %v754, %v794
  %796 = vdwg.mxu0
  %v797 = vand.u32 %v398, 4294901760
  %v798 = vsub.f32 %v398, %v797
  %v799 = vand.u32 %v798, 4294901760
  %v800 = vsub.f32 %v798, %v799
  %v801 = vand.u32 %v800, 4294901760
  %802 = vmatpush.msra.mxu0 %v801
  %v803 = vand.u32 %v397, 4294901760
  %v804 = vsub.f32 %v397, %v803
  %v805 = vand.u32 %v804, 4294901760
  %v806 = vsub.f32 %v804, %v805
  %v807 = vand.u32 %v806, 4294901760
  %808 = vmatpush.msra.mxu0 %v807
  %v809 = vand.u32 %v396, 4294901760
  %v810 = vsub.f32 %v396, %v809
  %v811 = vand.u32 %v810, 4294901760
  %v812 = vsub.f32 %v810, %v811
  %v813 = vand.u32 %v812, 4294901760
  %814 = vmatpush.msra.mxu0 %v813
  %v815 = vand.u32 %v395, 4294901760
  %v816 = vsub.f32 %v395, %v815
  %v817 = vand.u32 %v816, 4294901760
  %v818 = vsub.f32 %v816, %v817
  %v819 = vand.u32 %v818, 4294901760
  %820 = vmatpush.msra.mxu0 %v819
  %v821 = vand.u32 %v394, 4294901760
  %v822 = vsub.f32 %v394, %v821
  %v823 = vand.u32 %v822, 4294901760
  %v824 = vsub.f32 %v822, %v823
  %v825 = vand.u32 %v824, 4294901760
  %826 = vmatpush.msra.mxu0 %v825
  %v827 = vand.u32 %v393, 4294901760
  %v828 = vsub.f32 %v393, %v827
  %v829 = vand.u32 %v828, 4294901760
  %v830 = vsub.f32 %v828, %v829
  %v831 = vand.u32 %v830, 4294901760
  %832 = vmatpush.msra.mxu0 %v831
  %v833 = vand.u32 %v392, 4294901760
  %v834 = vsub.f32 %v392, %v833
  %v835 = vand.u32 %v834, 4294901760
  %v836 = vsub.f32 %v834, %v835
  %v837 = vand.u32 %v836, 4294901760
  %838 = vmatpush.msra.mxu0 %v837
  %v839 = vand.u32 %v391, 4294901760
  %v840 = vsub.f32 %v391, %v839
  %v841 = vand.u32 %v840, 4294901760
  %v842 = vsub.f32 %v840, %v841
  %v843 = vand.u32 %v842, 4294901760
  %844 = vmatpush.msra.mxu0 %v843
  %v845 = vand.u32 %v390, 4294901760
  %v846 = vsub.f32 %v390, %v845
  %v847 = vand.u32 %v846, 4294901760
  %v848 = vsub.f32 %v846, %v847
  %v849 = vand.u32 %v848, 4294901760
  %850 = vmatpush.msra.mxu0 %v849
  %v851 = vand.u32 %v389, 4294901760
  %v852 = vsub.f32 %v389, %v851
  %v853 = vand.u32 %v852, 4294901760
  %v854 = vsub.f32 %v852, %v853
  %v855 = vand.u32 %v854, 4294901760
  %856 = vmatpush.msra.mxu0 %v855
  %v857 = vand.u32 %v388, 4294901760
  %v858 = vsub.f32 %v388, %v857
  %v859 = vand.u32 %v858, 4294901760
  %v860 = vsub.f32 %v858, %v859
  %v861 = vand.u32 %v860, 4294901760
  %862 = vmatpush.msra.mxu0 %v861
  %v863 = vand.u32 %v387, 4294901760
  %v864 = vsub.f32 %v387, %v863
  %v865 = vand.u32 %v864, 4294901760
  %v866 = vsub.f32 %v864, %v865
  %v867 = vand.u32 %v866, 4294901760
  %868 = vmatpush.msra.mxu0 %v867
  %v869 = vand.u32 %v386, 4294901760
  %v870 = vsub.f32 %v386, %v869
  %v871 = vand.u32 %v870, 4294901760
  %v872 = vsub.f32 %v870, %v871
  %v873 = vand.u32 %v872, 4294901760
  %874 = vmatpush.msra.mxu0 %v873
  %v875 = vand.u32 %v385, 4294901760
  %v876 = vsub.f32 %v385, %v875
  %v877 = vand.u32 %v876, 4294901760
  %v878 = vsub.f32 %v876, %v877
  %v879 = vand.u32 %v878, 4294901760
  %880 = vmatpush.msra.mxu0 %v879
  %v881 = vand.u32 %v384, 4294901760
  %v882 = vsub.f32 %v384, %v881
  %v883 = vand.u32 %v882, 4294901760
  %v884 = vsub.f32 %v882, %v883
  %v885 = vand.u32 %v884, 4294901760
  %886 = vmatpush.msra.mxu0 %v885
  %v887 = vand.u32 %v383, 4294901760
  %v888 = vsub.f32 %v383, %v887
  %v889 = vand.u32 %v888, 4294901760
  %v890 = vsub.f32 %v888, %v889
  %v891 = vand.u32 %v890, 4294901760
  %892 = vmatpush.msra.mxu0 %v891
  %v893 = vand.u32 %v23, 4294901760
  %894 = vmatmul.f32.gmra.mxu0 %v893
  %v895 = vpop.f32.mrf.mxu0
  %v896 = vadd.f32 %v795, %v895
  %897 = vdwg.mxu0
  %v898 = vand.u32 %v398, 4294901760
  %v899 = vsub.f32 %v398, %v898
  %900 = vmatpush.msra.mxu0 %v899
  %v901 = vand.u32 %v397, 4294901760
  %v902 = vsub.f32 %v397, %v901
  %903 = vmatpush.msra.mxu0 %v902
  %v904 = vand.u32 %v396, 4294901760
  %v905 = vsub.f32 %v396, %v904
  %906 = vmatpush.msra.mxu0 %v905
  %v907 = vand.u32 %v395, 4294901760
  %v908 = vsub.f32 %v395, %v907
  %909 = vmatpush.msra.mxu0 %v908
  %v910 = vand.u32 %v394, 4294901760
  %v911 = vsub.f32 %v394, %v910
  %912 = vmatpush.msra.mxu0 %v911
  %v913 = vand.u32 %v393, 4294901760
  %v914 = vsub.f32 %v393, %v913
  %915 = vmatpush.msra.mxu0 %v914
  %v916 = vand.u32 %v392, 4294901760
  %v917 = vsub.f32 %v392, %v916
  %918 = vmatpush.msra.mxu0 %v917
  %v919 = vand.u32 %v391, 4294901760
  %v920 = vsub.f32 %v391, %v919
  %921 = vmatpush.msra.mxu0 %v920
  %v922 = vand.u32 %v390, 4294901760
  %v923 = vsub.f32 %v390, %v922
  %924 = vmatpush.msra.mxu0 %v923
  %v925 = vand.u32 %v389, 4294901760
  %v926 = vsub.f32 %v389, %v925
  %927 = vmatpush.msra.mxu0 %v926
  %v928 = vand.u32 %v388, 4294901760
  %v929 = vsub.f32 %v388, %v928
  %930 = vmatpush.msra.mxu0 %v929
  %v931 = vand.u32 %v387, 4294901760
  %v932 = vsub.f32 %v387, %v931
  %933 = vmatpush.msra.mxu0 %v932
  %v934 = vand.u32 %v386, 4294901760
  %v935 = vsub.f32 %v386, %v934
  %936 = vmatpush.msra.mxu0 %v935
  %v937 = vand.u32 %v385, 4294901760
  %v938 = vsub.f32 %v385, %v937
  %939 = vmatpush.msra.mxu0 %v938
  %v940 = vand.u32 %v384, 4294901760
  %v941 = vsub.f32 %v384, %v940
  %942 = vmatpush.msra.mxu0 %v941
  %v943 = vand.u32 %v383, 4294901760
  %v944 = vsub.f32 %v383, %v943
  %945 = vmatpush.msra.mxu0 %v944
  %v946 = vand.u32 %v23, 4294901760
  %v947 = vsub.f32 %v23, %v946
  %948 = vmatmul.f32.gmra.mxu0 %v947
  %v949 = vpop.f32.mrf.mxu0
  %v950 = vadd.f32 %v896, %v949
  %951 = vdwg.mxu0
  %v952 = vand.u32 %v398, 4294901760
  %953 = vmatpush.msra.mxu0 %v952
  %v954 = vand.u32 %v397, 4294901760
  %955 = vmatpush.msra.mxu0 %v954
  %v956 = vand.u32 %v396, 4294901760
  %957 = vmatpush.msra.mxu0 %v956
  %v958 = vand.u32 %v395, 4294901760
  %959 = vmatpush.msra.mxu0 %v958
  %v960 = vand.u32 %v394, 4294901760
  %961 = vmatpush.msra.mxu0 %v960
  %v962 = vand.u32 %v393, 4294901760
  %963 = vmatpush.msra.mxu0 %v962
  %v964 = vand.u32 %v392, 4294901760
  %965 = vmatpush.msra.mxu0 %v964
  %v966 = vand.u32 %v391, 4294901760
  %967 = vmatpush.msra.mxu0 %v966
  %v968 = vand.u32 %v390, 4294901760
  %969 = vmatpush.msra.mxu0 %v968
  %v970 = vand.u32 %v389, 4294901760
  %971 = vmatpush.msra.mxu0 %v970
  %v972 = vand.u32 %v388, 4294901760
  %973 = vmatpush.msra.mxu0 %v972
  %v974 = vand.u32 %v387, 4294901760
  %975 = vmatpush.msra.mxu0 %v974
  %v976 = vand.u32 %v386, 4294901760
  %977 = vmatpush.msra.mxu0 %v976
  %v978 = vand.u32 %v385, 4294901760
  %979 = vmatpush.msra.mxu0 %v978
  %v980 = vand.u32 %v384, 4294901760
  %981 = vmatpush.msra.mxu0 %v980
  %v982 = vand.u32 %v383, 4294901760
  %983 = vmatpush.msra.mxu0 %v982
  %v984 = vand.u32 %v23, 4294901760
  %v985 = vsub.f32 %v23, %v984
  %v986 = vand.u32 %v985, 4294901760
  %987 = vmatmul.f32.gmra.mxu0 %v986
  %v988 = vpop.f32.mrf.mxu0
  %v989 = vadd.f32 %v950, %v988
  %990 = vdwg.mxu0
  %v991 = vand.u32 %v398, 4294901760
  %v992 = vsub.f32 %v398, %v991
  %v993 = vand.u32 %v992, 4294901760
  %994 = vmatpush.msra.mxu0 %v993
  %v995 = vand.u32 %v397, 4294901760
  %v996 = vsub.f32 %v397, %v995
  %v997 = vand.u32 %v996, 4294901760
  %998 = vmatpush.msra.mxu0 %v997
  %v999 = vand.u32 %v396, 4294901760
  %v1000 = vsub.f32 %v396, %v999
  %v1001 = vand.u32 %v1000, 4294901760
  %1002 = vmatpush.msra.mxu0 %v1001
  %v1003 = vand.u32 %v395, 4294901760
  %v1004 = vsub.f32 %v395, %v1003
  %v1005 = vand.u32 %v1004, 4294901760
  %1006 = vmatpush.msra.mxu0 %v1005
  %v1007 = vand.u32 %v394, 4294901760
  %v1008 = vsub.f32 %v394, %v1007
  %v1009 = vand.u32 %v1008, 4294901760
  %1010 = vmatpush.msra.mxu0 %v1009
  %v1011 = vand.u32 %v393, 4294901760
  %v1012 = vsub.f32 %v393, %v1011
  %v1013 = vand.u32 %v1012, 4294901760
  %1014 = vmatpush.msra.mxu0 %v1013
  %v1015 = vand.u32 %v392, 4294901760
  %v1016 = vsub.f32 %v392, %v1015
  %v1017 = vand.u32 %v1016, 4294901760
  %1018 = vmatpush.msra.mxu0 %v1017
  %v1019 = vand.u32 %v391, 4294901760
  %v1020 = vsub.f32 %v391, %v1019
  %v1021 = vand.u32 %v1020, 4294901760
  %1022 = vmatpush.msra.mxu0 %v1021
  %v1023 = vand.u32 %v390, 4294901760
  %v1024 = vsub.f32 %v390, %v1023
  %v1025 = vand.u32 %v1024, 4294901760
  %1026 = vmatpush.msra.mxu0 %v1025
  %v1027 = vand.u32 %v389, 4294901760
  %v1028 = vsub.f32 %v389, %v1027
  %v1029 = vand.u32 %v1028, 4294901760
  %1030 = vmatpush.msra.mxu0 %v1029
  %v1031 = vand.u32 %v388, 4294901760
  %v1032 = vsub.f32 %v388, %v1031
  %v1033 = vand.u32 %v1032, 4294901760
  %1034 = vmatpush.msra.mxu0 %v1033
  %v1035 = vand.u32 %v387, 4294901760
  %v1036 = vsub.f32 %v387, %v1035
  %v1037 = vand.u32 %v1036, 4294901760
  %1038 = vmatpush.msra.mxu0 %v1037
  %v1039 = vand.u32 %v386, 4294901760
  %v1040 = vsub.f32 %v386, %v1039
  %v1041 = vand.u32 %v1040, 4294901760
  %1042 = vmatpush.msra.mxu0 %v1041
  %v1043 = vand.u32 %v385, 4294901760
  %v1044 = vsub.f32 %v385, %v1043
  %v1045 = vand.u32 %v1044, 4294901760
  %1046 = vmatpush.msra.mxu0 %v1045
  %v1047 = vand.u32 %v384, 4294901760
  %v1048 = vsub.f32 %v384, %v1047
  %v1049 = vand.u32 %v1048, 4294901760
  %1050 = vmatpush.msra.mxu0 %v1049
  %v1051 = vand.u32 %v383, 4294901760
  %v1052 = vsub.f32 %v383, %v1051
  %v1053 = vand.u32 %v1052, 4294901760
  %1054 = vmatpush.msra.mxu0 %v1053
  %v1055 = vand.u32 %v23, 4294901760
  %1056 = vmatmul.f32.gmra.mxu0 %v1055
  %v1057 = vpop.f32.mrf.mxu0
  %v1058 = vadd.f32 %v989, %v1057
  %1059 = vdwg.mxu0
  %v1060 = vand.u32 %v398, 4294901760
  %1061 = vmatpush.msra.mxu0 %v1060
  %v1062 = vand.u32 %v397, 4294901760
  %1063 = vmatpush.msra.mxu0 %v1062
  %v1064 = vand.u32 %v396, 4294901760
  %1065 = vmatpush.msra.mxu0 %v1064
  %v1066 = vand.u32 %v395, 4294901760
  %1067 = vmatpush.msra.mxu0 %v1066
  %v1068 = vand.u32 %v394, 4294901760
  %1069 = vmatpush.msra.mxu0 %v1068
  %v1070 = vand.u32 %v393, 4294901760
  %1071 = vmatpush.msra.mxu0 %v1070
  %v1072 = vand.u32 %v392, 4294901760
  %1073 = vmatpush.msra.mxu0 %v1072
  %v1074 = vand.u32 %v391, 4294901760
  %1075 = vmatpush.msra.mxu0 %v1074
  %v1076 = vand.u32 %v390, 4294901760
  %1077 = vmatpush.msra.mxu0 %v1076
  %v1078 = vand.u32 %v389, 4294901760
  %1079 = vmatpush.msra.mxu0 %v1078
  %v1080 = vand.u32 %v388, 4294901760
  %1081 = vmatpush.msra.mxu0 %v1080
  %v1082 = vand.u32 %v387, 4294901760
  %1083 = vmatpush.msra.mxu0 %v1082
  %v1084 = vand.u32 %v386, 4294901760
  %1085 = vmatpush.msra.mxu0 %v1084
  %v1086 = vand.u32 %v385, 4294901760
  %1087 = vmatpush.msra.mxu0 %v1086
  %v1088 = vand.u32 %v384, 4294901760
  %1089 = vmatpush.msra.mxu0 %v1088
  %v1090 = vand.u32 %v383, 4294901760
  %1091 = vmatpush.msra.mxu0 %v1090
  %v1092 = vand.u32 %v23, 4294901760
  %1093 = vmatmul.f32.gmra.mxu0 %v1092
  %v1094 = vpop.f32.mrf.mxu0
  %v1095 = vadd.f32 %v1058, %v1094
  %1096 = vdwg.mxu0
  %v1097 = vmul.f32 %v1095, 0.5
  %v1098 = vsub.f32 %v381, %v1097
  %vm1099 = vcmask 7168
  %1100 = vst.msk [vmem:[%s4] sm:$0xff] %vm1099, %v1098
  // Predicated region
  $region18: #{tpu_custom_call.1} parent=0 // pred_check
    _
  $region19: #{tpu_custom_call.1} parent=0 // pred_check_branch
    %1102 = sbr.rel (0) target = $region21
  $region20: #{tpu_custom_call.1} parent=0 // pred_region
    _
  $region21: #{tpu_custom_call.1} parent=0 // pred_fallthru
    _
  // Predicated region
  $region22: #{tpu_custom_call.1} parent=0 // pred_check
    _
  $region23: #{tpu_custom_call.1} parent=0 // pred_check_branch
    %1104 = sbr.rel (0) target = $region25
  $region24: #{tpu_custom_call.1} parent=0 // pred_region
    _
  $region25: #{tpu_custom_call.1} parent=0 // pred_fallthru
    _

</llo_original>
